<compile_context>
chip_gen: v5e
topology: v5e:2x2
jax: 0.10.0
libtpu: 0.0.40
codegen_flags: <defaults>
</compile_context>

<pallas_src>
import functools

import jax
import jax.numpy as jnp
from jax.experimental import pallas as pl
from jax.experimental.pallas import tpu as pltpu

_LANE = 128
_SUBLANE = 8


def _round_up(x, m):
    return (x + m - 1) // m * m


def _fc_block_kernel(state_ref, cond_ref, w1s_ref, w1c_ref, b1_ref,
                     w2_ref, b2_ref, out_ref):
    # down = ReLU -> Linear.  torch.cat([state, cond], 1) is fused as
    # relu(state) @ w1_state + relu(cond) @ w1_cond (w1 split by rows).
    s = jnp.maximum(state_ref[...], 0.0).astype(jnp.bfloat16)
    c = jnp.maximum(cond_ref[...], 0.0).astype(jnp.bfloat16)
    h = jnp.dot(s, w1s_ref[...], preferred_element_type=jnp.float32)
    h = h + jnp.dot(c, w1c_ref[...], preferred_element_type=jnp.float32)
    h = h + b1_ref[...]                          # f32 bias add (safe on v5e VPU)
    # up = ReLU -> Linear.
    h = jnp.maximum(h, 0.0).astype(jnp.bfloat16)
    y = jnp.dot(h, w2_ref[...], preferred_element_type=jnp.float32)
    out_ref[...] = (y + b2_ref[...]).astype(out_ref.dtype)   # lane-dense store


def _fc_block_pallas(state, cond, w1s, w1c, b1, w2, b2, *, tm):
    bp, d_state = state.shape
    cond_nc = cond.shape[1]
    inner_p = w1s.shape[1]
    d_out_p = w2.shape[1]
    assert bp % tm == 0

    grid = (bp // tm,)

    # Advisory cost for XLA scheduling around the custom call.
    flops = 2 * bp * (d_state * inner_p + cond_nc * inner_p + inner_p * d_out_p)
    bytes_accessed = (
        (state.size + cond.size) * 4
        + (w1s.size + w1c.size + w2.size) * 2
        + (b1.size + b2.size) * 4
        + bp * d_out_p * 4)

    # Explicit VMEM budget: (double-buffered) weights + double-buffered
    # activation tiles, with slack.  Capped for v7x's 64 MiB VMEM.
    weight_bytes = (w1s.size + w1c.size + w2.size) * 2 + (b1.size + b2.size) * 4
    act_tile_bytes = tm * (d_state + cond_nc + inner_p + d_out_p) * 4
    vmem_limit = int(min(max(2 * weight_bytes + 2 * act_tile_bytes + (2 << 20),
                             4 << 20),
                         64 << 20))

    return pl.pallas_call(
        _fc_block_kernel,
        out_shape=jax.ShapeDtypeStruct((bp, d_out_p), jnp.float32),
        grid=grid,
        in_specs=[
            pl.BlockSpec((tm, d_state), lambda i: (i, 0)),       # state tile
            pl.BlockSpec((tm, cond_nc), lambda i: (i, 0)),       # cond tile
            pl.BlockSpec((d_state, inner_p), lambda i: (0, 0)),  # w1 (state rows)
            pl.BlockSpec((cond_nc, inner_p), lambda i: (0, 0)),  # w1 (cond rows)
            pl.BlockSpec((1, inner_p), lambda i: (0, 0)),        # b1
            pl.BlockSpec((inner_p, d_out_p), lambda i: (0, 0)),  # w2
            pl.BlockSpec((1, d_out_p), lambda i: (0, 0)),        # b2
        ],
        out_specs=pl.BlockSpec((tm, d_out_p), lambda i: (i, 0)),
        compiler_params=pltpu.CompilerParams(
            dimension_semantics=("parallel",),
            vmem_limit_bytes=vmem_limit),
        cost_estimate=pl.CostEstimate(
            flops=flops, transcendentals=0, bytes_accessed=bytes_accessed),
    )(state, cond, w1s, w1c, b1, w2, b2)


class FlattenFCBlockPallas:
    """JAX/Pallas re-implementation of FlattenFCBlock.forward."""

    def __init__(self, outer_nc, inner_nc, cond_nc, input_w=3, input_h=3,
                 input_nc=None, key=None):
        if input_nc is None:
            input_nc = outer_nc
        self.outer_nc = outer_nc
        self.inner_nc = inner_nc
        self.input_nc = input_nc
        self.input_w = input_w
        self.input_h = input_h
        self.cond_nc = cond_nc

        self._d_state = input_w * input_h * input_nc
        d_in = self._d_state + cond_nc
        self._d_out = input_w * input_h * outer_nc
        self._inner_p = _round_up(inner_nc, _LANE)
        self._d_out_p = _round_up(self._d_out, _LANE)

        if key is None:
            key = jax.random.PRNGKey(0)
        k1, k2, k3, k4 = jax.random.split(key, 4)

        # Deterministic init mimicking nn.Linear's uniform(-1/sqrt(fan_in), ...).
        bound1 = 1.0 / (d_in ** 0.5)
        bound2 = 1.0 / (inner_nc ** 0.5)
        w1 = jax.random.uniform(k1, (d_in, self.inner_nc), jnp.float32,
                                -bound1, bound1)
        b1 = jax.random.uniform(k2, (self.inner_nc,), jnp.float32,
                                -bound1, bound1)
        w2 = jax.random.uniform(k3, (self.inner_nc, self._d_out), jnp.float32,
                                -bound2, bound2)
        b2 = jax.random.uniform(k4, (self._d_out,), jnp.float32,
                                -bound2, bound2)

        # Zero-pad feature dims to 128-lane multiples; split w1 rows by
        # [state | cond]; store matmul operands as bf16 (MXU peak path).
        w1_p = jnp.zeros((d_in, self._inner_p), jnp.float32)
        w1_p = w1_p.at[:, :self.inner_nc].set(w1)
        self.w1s = w1_p[:self._d_state].astype(jnp.bfloat16)
        self.w1c = w1_p[self._d_state:].astype(jnp.bfloat16)
        self.b1 = (jnp.zeros((1, self._inner_p), jnp.float32)
                   .at[0, :self.inner_nc].set(b1))
        self.w2 = (jnp.zeros((self._inner_p, self._d_out_p), jnp.float32)
                   .at[:self.inner_nc, :self._d_out].set(w2)
                   .astype(jnp.bfloat16))
        self.b2 = (jnp.zeros((1, self._d_out_p), jnp.float32)
                   .at[0, :self._d_out].set(b2))
        # TODO(synk): if inner_nc / d_out grow beyond VMEM residency, add grid
        # axes over the weight N/K dims (stream w1/w2 tiles) instead of keeping
        # them fully VMEM-resident.

    @functools.partial(jax.jit, static_argnums=0)
    def __call__(self, x, cond):
        B = x.shape[0]
        # Flatten (B, C, W, H) -> (B, C*W*H) (row-major, same as torch .view).
        state = x.reshape(B, -1).astype(jnp.float32)
        cond = cond.astype(jnp.float32)

        # Batch tile: multiples of 8 sublanes; up to 256 rows to feed the
        # 256x256 MXU on v6e/v7x and amortize per-step grid overhead.
        tm = min(256, _round_up(B, _SUBLANE))
        bp = _round_up(B, tm)
        if bp != B:
            state = jnp.pad(state, ((0, bp - B), (0, 0)))
            cond = jnp.pad(cond, ((0, bp - B), (0, 0)))

        y_p = _fc_block_pallas(state, cond, self.w1s, self.w1c, self.b1,
                               self.w2, self.b2, tm=tm)

        # state.view(-1, outer_nc, W, H) (drop lane/batch padding first).
        y = y_p[:B, :self._d_out].reshape(B, self.outer_nc,
                                          self.input_w, self.input_h)
        # TODO(synk): the channel-dim torch.cat([x, state], 1) is left to XLA;
        # fusing the exact-f32 x passthrough into the kernel would require an
        # unaligned lane-offset store for no measurable HBM saving here.
        return jnp.concatenate([x.astype(jnp.float32), y], axis=1)


def _reference_forward(x, cond, w1s, w1c, b1, w2, b2, outer_nc, w, h, d_out):
    """Pure-JAX reference with identical bf16/f32 casting to the kernel."""
    B = x.shape[0]
    state = x.reshape(B, -1).astype(jnp.float32)
    s = jnp.maximum(state, 0.0).astype(jnp.bfloat16)
    c = jnp.maximum(cond.astype(jnp.float32), 0.0).astype(jnp.bfloat16)
    hmid = (jnp.dot(s, w1s, preferred_element_type=jnp.float32)
            + jnp.dot(c, w1c, preferred_element_type=jnp.float32) + b1)
    hb = jnp.maximum(hmid, 0.0).astype(jnp.bfloat16)
    y = jnp.dot(hb, w2, preferred_element_type=jnp.float32) + b2
    y = y[:, :d_out].reshape(B, outer_nc, w, h)
    return jnp.concatenate([x.astype(jnp.float32), y], axis=1)


if __name__ == "__main__":
    key = jax.random.PRNGKey(0)
    kx, kc, kp = jax.random.split(key, 3)

    B, outer_nc, inner_nc, cond_nc = 2, 4, 32, 8
    input_w = input_h = 3   # module default spatial size

    x = jax.random.normal(kx, (B, outer_nc, input_w, input_h), jnp.float32)
    cond = jax.random.normal(kc, (B, cond_nc), jnp.float32)

    block = FlattenFCBlockPallas(outer_nc, inner_nc, cond_nc,
                                 input_w=input_w, input_h=input_h, key=kp)

    out = block(x, cond)
    out = jax.block_until_ready(out)

    expected_shape = (B, outer_nc + outer_nc, input_w, input_h)
    assert out.shape == expected_shape, (out.shape, expected_shape)

    ref = _reference_forward(x, cond, block.w1s, block.w1c, block.b1,
                             block.w2, block.b2, outer_nc, input_w, input_h,
                             block._d_out)
    assert jnp.allclose(out, ref, atol=1e-3, rtol=1e-3), (
        float(jnp.max(jnp.abs(out - ref))))

    print("KERNEL_OK")
</pallas_src>

<mosaic_0001>
module attributes {stable_mosaic.version = 11 : i64} {
  func.func @_fc_block_kernel(%arg0: i32, %arg1: memref<8x36xf32, #tpu.memory_space<vmem>>, %arg2: memref<8x8xf32, #tpu.memory_space<vmem>>, %arg3: memref<36x128xbf16, #tpu.memory_space<vmem>>, %arg4: memref<8x128xbf16, #tpu.memory_space<vmem>>, %arg5: memref<1x128xf32, #tpu.memory_space<vmem>>, %arg6: memref<128x128xbf16, #tpu.memory_space<vmem>>, %arg7: memref<1x128xf32, #tpu.memory_space<vmem>>, %arg8: memref<8x128xf32, #tpu.memory_space<vmem>>) attributes {dimension_semantics = [#tpu.dimension_semantics<parallel>], iteration_bounds = array<i64: 1>, scalar_prefetch = 0 : i64, scratch_operands = 0 : i64, tpu.core_type = #tpu.core_type<tc>, window_params = [{transform_indices = @transform_0, window_bounds = array<i64: 8, 36>}, {transform_indices = @transform_1, window_bounds = array<i64: 8, 8>}, {pipeline_mode = #tpu.pipeline_mode<synchronous>, transform_indices = @transform_2, window_bounds = array<i64: 36, 128>}, {pipeline_mode = #tpu.pipeline_mode<synchronous>, transform_indices = @transform_3, window_bounds = array<i64: 8, 128>}, {pipeline_mode = #tpu.pipeline_mode<synchronous>, transform_indices = @transform_4, window_bounds = array<i64: 1, 128>}, {pipeline_mode = #tpu.pipeline_mode<synchronous>, transform_indices = @transform_5, window_bounds = array<i64: 128, 128>}, {pipeline_mode = #tpu.pipeline_mode<synchronous>, transform_indices = @transform_6, window_bounds = array<i64: 1, 128>}, {transform_indices = @transform_7, window_bounds = array<i64: 8, 128>}]} {
    %c0 = arith.constant 0 : index
    %c0_0 = arith.constant 0 : index
    %0 = vector.load %arg1[%c0, %c0_0] : memref<8x36xf32, #tpu.memory_space<vmem>>, vector<8x36xf32>
    %cst = arith.constant 0.000000e+00 : f32
    %1 = vector.broadcast %cst : f32 to vector<8x36xf32>
    %2 = arith.maximumf %0, %1 : vector<8x36xf32>
    %3 = arith.truncf %2 : vector<8x36xf32> to vector<8x36xbf16>
    %c0_1 = arith.constant 0 : index
    %c0_2 = arith.constant 0 : index
    %4 = vector.load %arg2[%c0_1, %c0_2] : memref<8x8xf32, #tpu.memory_space<vmem>>, vector<8x8xf32>
    %cst_3 = arith.constant 0.000000e+00 : f32
    %5 = vector.broadcast %cst_3 : f32 to vector<8x8xf32>
    %6 = arith.maximumf %4, %5 : vector<8x8xf32>
    %7 = arith.truncf %6 : vector<8x8xf32> to vector<8x8xbf16>
    %c0_4 = arith.constant 0 : index
    %c0_5 = arith.constant 0 : index
    %8 = vector.load %arg3[%c0_4, %c0_5] : memref<36x128xbf16, #tpu.memory_space<vmem>>, vector<36x128xbf16>
    %cst_6 = arith.constant dense<0.000000e+00> : vector<8x128xf32>
    %9 = tpu.matmul %3, %8, %cst_6 {dimension_numbers = #tpu.dot_dimension_numbers<[1], [0], [0], [1], [0, 0, 1, 1], [], []>} : vector<8x36xbf16>, vector<36x128xbf16>, vector<8x128xf32> -> vector<8x128xf32>
    %c0_7 = arith.constant 0 : index
    %c0_8 = arith.constant 0 : index
    %10 = vector.load %arg4[%c0_7, %c0_8] : memref<8x128xbf16, #tpu.memory_space<vmem>>, vector<8x128xbf16>
    %cst_9 = arith.constant dense<0.000000e+00> : vector<8x128xf32>
    %11 = tpu.matmul %7, %10, %cst_9 {dimension_numbers = #tpu.dot_dimension_numbers<[1], [0], [0], [1], [0, 0, 1, 1], [], []>} : vector<8x8xbf16>, vector<8x128xbf16>, vector<8x128xf32> -> vector<8x128xf32>
    %12 = arith.addf %9, %11 : vector<8x128xf32>
    %c0_10 = arith.constant 0 : index
    %c0_11 = arith.constant 0 : index
    %13 = vector.load %arg5[%c0_10, %c0_11] : memref<1x128xf32, #tpu.memory_space<vmem>>, vector<1x128xf32>
    %14 = vector.broadcast %13 : vector<1x128xf32> to vector<8x128xf32>
    %15 = arith.addf %12, %14 : vector<8x128xf32>
    %cst_12 = arith.constant 0.000000e+00 : f32
    %16 = vector.broadcast %cst_12 : f32 to vector<8x128xf32>
    %17 = arith.maximumf %15, %16 : vector<8x128xf32>
    %18 = arith.truncf %17 : vector<8x128xf32> to vector<8x128xbf16>
    %c0_13 = arith.constant 0 : index
    %c0_14 = arith.constant 0 : index
    %19 = vector.load %arg6[%c0_13, %c0_14] : memref<128x128xbf16, #tpu.memory_space<vmem>>, vector<128x128xbf16>
    %cst_15 = arith.constant dense<0.000000e+00> : vector<8x128xf32>
    %20 = tpu.matmul %18, %19, %cst_15 {dimension_numbers = #tpu.dot_dimension_numbers<[1], [0], [0], [1], [0, 0, 1, 1], [], []>} : vector<8x128xbf16>, vector<128x128xbf16>, vector<8x128xf32> -> vector<8x128xf32>
    %c0_16 = arith.constant 0 : index
    %c0_17 = arith.constant 0 : index
    %21 = vector.load %arg7[%c0_16, %c0_17] : memref<1x128xf32, #tpu.memory_space<vmem>>, vector<1x128xf32>
    %22 = vector.broadcast %21 : vector<1x128xf32> to vector<8x128xf32>
    %23 = arith.addf %20, %22 : vector<8x128xf32>
    %c0_18 = arith.constant 0 : index
    %c0_19 = arith.constant 0 : index
    %24 = vector.load %arg8[%c0_18, %c0_19] : memref<8x128xf32, #tpu.memory_space<vmem>>, vector<8x128xf32>
    tpu.vector_store %arg8[%c0_18, %c0_19], %23 {strides = array<i32>} : memref<8x128xf32, #tpu.memory_space<vmem>>, vector<8x128xf32>,
    return
  }
  func.func @transform_0(%arg0: i32) -> (i32, i32) {
    %c0_i32 = arith.constant 0 : i32
    %c0_i32_0 = arith.constant 0 : i32
    return %arg0, %c0_i32 : i32, i32
  }
  func.func @transform_1(%arg0: i32) -> (i32, i32) {
    %c0_i32 = arith.constant 0 : i32
    %c0_i32_0 = arith.constant 0 : i32
    return %arg0, %c0_i32 : i32, i32
  }
  func.func @transform_2(%arg0: i32) -> (i32, i32) {
    %c0_i32 = arith.constant 0 : i32
    %c0_i32_0 = arith.constant 0 : i32
    %c0_i32_1 = arith.constant 0 : i32
    return %c0_i32, %c0_i32_0 : i32, i32
  }
  func.func @transform_3(%arg0: i32) -> (i32, i32) {
    %c0_i32 = arith.constant 0 : i32
    %c0_i32_0 = arith.constant 0 : i32
    %c0_i32_1 = arith.constant 0 : i32
    return %c0_i32, %c0_i32_0 : i32, i32
  }
  func.func @transform_4(%arg0: i32) -> (i32, i32) {
    %c0_i32 = arith.constant 0 : i32
    %c0_i32_0 = arith.constant 0 : i32
    %c0_i32_1 = arith.constant 0 : i32
    return %c0_i32, %c0_i32_0 : i32, i32
  }
  func.func @transform_5(%arg0: i32) -> (i32, i32) {
    %c0_i32 = arith.constant 0 : i32
    %c0_i32_0 = arith.constant 0 : i32
    %c0_i32_1 = arith.constant 0 : i32
    return %c0_i32, %c0_i32_0 : i32, i32
  }
  func.func @transform_6(%arg0: i32) -> (i32, i32) {
    %c0_i32 = arith.constant 0 : i32
    %c0_i32_0 = arith.constant 0 : i32
    %c0_i32_1 = arith.constant 0 : i32
    return %c0_i32, %c0_i32_0 : i32, i32
  }
  func.func @transform_7(%arg0: i32) -> (i32, i32) {
    %c0_i32 = arith.constant 0 : i32
    %c0_i32_0 = arith.constant 0 : i32
    return %arg0, %c0_i32 : i32, i32
  }
}

</mosaic_0001>

<llo_original>
// kernel: a_call__.1
$region0: #{a_call__.1}
  #allocation0 [shape = 'u32[]', space=smem, size = 0x4, offset = 0x4, fixed_abs, tag = 'smem constant byte address 0x4 - core index']
  #allocation1 [shape = 'u32[72,128]{1,0:T(1,128)}', space=vmem, size = 0x9000, scoped, tag = 'internal scratch']
  %s0 = inlined_call_operand.vmem [shape: f32[8,36], index: 0, kind: input, shape index: {}]
  %s1 = inlined_call_operand.vmem [shape: f32[8,8], index: 1, kind: input, shape index: {}]
  %s2 = inlined_call_operand.vmem [shape: bf16[36,128], index: 2, kind: input, shape index: {}]
  %s3 = inlined_call_operand.vmem [shape: bf16[8,128], index: 3, kind: input, shape index: {}]
  %s4 = inlined_call_operand.vmem [shape: f32[1,128], index: 4, kind: input, shape index: {}]
  %s5 = inlined_call_operand.vmem [shape: bf16[128,128], index: 5, kind: input, shape index: {}]
  %s6 = inlined_call_operand.vmem [shape: f32[1,128], index: 6, kind: input, shape index: {}]
  %s7 = inlined_call_operand.vmem [shape: f32[8,128], index: 7, kind: output, shape index: {}]
  %s8 = sld [smem:[#allocation0]]
  $region38: #{a_call__.1} parent=0
    _
  %s10 = ssub.s32 1, %s8
  %s11 = scalar_select 0, %s10, %s8
  // Predicated region
  $region2: #{a_call__.1} parent=0 // pred_check
    _
  $region3: #{a_call__.1} parent=0 // pred_check_branch
    %13 = sbr.rel (0) target = $region5
  $region4: #{a_call__.1} parent=0 // pred_region
    _
  $region5: #{a_call__.1} parent=0 // pred_fallthru
    _
  // Predicated region
  $region6: #{a_call__.1} parent=0 // pred_check
    _
  $region7: #{a_call__.1} parent=0 // pred_check_branch
    %15 = sbr.rel (0) target = $region9
  $region8: #{a_call__.1} parent=0 // pred_region
    _
  $region9: #{a_call__.1} parent=0 // pred_fallthru
    _
  // Predicated region
  $region10: #{a_call__.1} parent=0 // pred_check
    _
  $region11: #{a_call__.1} parent=0 // pred_check_branch
    %17 = sbr.rel (0) target = $region13
  $region12: #{a_call__.1} parent=0 // pred_region
    _
  $region13: #{a_call__.1} parent=0 // pred_fallthru
    _
  // Predicated region
  $region14: #{a_call__.1} parent=0 // pred_check
    _
  $region15: #{a_call__.1} parent=0 // pred_check_branch
    %19 = sbr.rel (0) target = $region17
  $region16: #{a_call__.1} parent=0 // pred_region
    _
  $region17: #{a_call__.1} parent=0 // pred_fallthru
    _
  // Predicated region
  $region18: #{a_call__.1} parent=0 // pred_check
    _
  $region19: #{a_call__.1} parent=0 // pred_check_branch
    %21 = sbr.rel (0) target = $region21
  $region20: #{a_call__.1} parent=0 // pred_region
    _
  $region21: #{a_call__.1} parent=0 // pred_fallthru
    _
  // Predicated region
  $region22: #{a_call__.1} parent=0 // pred_check
    _
  $region23: #{a_call__.1} parent=0 // pred_check_branch
    %23 = sbr.rel (0) target = $region25
  $region24: #{a_call__.1} parent=0 // pred_region
    _
  $region25: #{a_call__.1} parent=0 // pred_fallthru
    _
  // Predicated region
  $region26: #{a_call__.1} parent=0 // pred_check
    _
  $region27: #{a_call__.1} parent=0 // pred_check_branch
    %25 = sbr.rel (0) target = $region29
  $region28: #{a_call__.1} parent=0 // pred_region
    _
  $region29: #{a_call__.1} parent=0 // pred_fallthru
    _
  %v27 = vld [vmem:[%s0] sm:$0xff]
  %v28 = vmax.f32 %v27, 0.0
  %v29 = vpack.c.bf16 %v28, %v28
  %v30 = vld [vmem:[%s1] sm:$0xff]
  %v31 = vmax.f32 %v30, 0.0
  %v32 = vpack.c.bf16 %v31, %v31
  %v33 = vld [vmem:[%s2] sm:$0xf]
  %v34 = vld [vmem:[%s2 + $0x4] sm:$0xf]
  %v35 = vld [vmem:[%s2 + $0x8] sm:$0xf]
  %v36 = vld [vmem:[%s2 + $0xc] sm:$0xf]
  %v37 = vld [vmem:[%s2 + $0x10] sm:$0x3]
  %v38 = vld [vmem:[%s3] sm:$0xf]
  %vm39 = vcmask 64512
  %v41 = vsel %vm39, %v32, 0
  %vm43 = vcmask 1043456
  %v45 = vsel %vm43, %v38, 0
  %47 = vmatpush.bf16.msra.mxu0 0
  %48 = vmatpush.bf16.msra.mxu0 0
  %49 = vmatpush.bf16.msra.mxu0 0
  %50 = vmatpush.bf16.msra.mxu0 0
  %51 = vmatpush.bf16.msra.mxu0 0
  %52 = vmatpush.bf16.msra.mxu0 0
  %53 = vmatpush.bf16.msra.mxu0 0
  %54 = vmatpush.bf16.msra.mxu0 %v45
  %55 = vmatmul.bf16.gmra.mxu0 %v41
  %v56 = vpop.f32.mrf.mxu0
  %v57 = vadd.f32 0.0, %v56
  %v58 = vpop.f32.mrf.mxu0
  %59 = vdwg.mxu0
  %v65 = vunpack.c.l.b16 %v33
  %v66 = vunpack.c.l.b16 %v34
  %v67 = vunpack.c.l.b16 %v35
  %v68 = vunpack.c.l.b16 %v36
  %v69 = vunpack.c.l.b16 %v37
  %v70 = vpack.c.b16 %v66, %v65
  %v71 = vpack.c.b16 %v68, %v67
  %v72 = vpack.c.b16 %v69, %v69
  %vm75 = vcmask 293888
  %v77 = vsel %vm75, %v29, 0
  %vm79 = vcmask 1041408
  %v81 = vsel %vm79, %v72, 0
  %83 = vmatpush.bf16.msra.mxu0 0
  %84 = vmatpush.bf16.msra.mxu0 0
  %85 = vmatpush.bf16.msra.mxu0 0
  %86 = vmatpush.bf16.msra.mxu0 0
  %87 = vmatpush.bf16.msra.mxu0 0
  %88 = vmatpush.bf16.msra.mxu0 %v81
  %89 = vmatpush.bf16.msra.mxu0 %v71
  %90 = vmatpush.bf16.msra.mxu0 %v70
  %91 = vmatmul.bf16.gmra.mxu0 %v77
  %v92 = vpop.f32.mrf.mxu0
  %v93 = vadd.f32 %v57, %v92
  %v94 = vpop.f32.mrf.mxu0
  %95 = vdwg.mxu0
  %v96 = vld [vmem:[%s4] sm:$0x1]
  %v98 = vperm.slane %v96, 0
  %v100 = vadd.f32 %v93, %v98
  %v101 = vmax.f32 %v100, 0.0
  %v102 = vpack.c.bf16 %v101, %v101
  %v103 = vld [vmem:[%s5] sm:$0xf]
  %v104 = vld [vmem:[%s5 + $0x4] sm:$0xf]
  %v105 = vld [vmem:[%s5 + $0x8] sm:$0xf]
  %v106 = vld [vmem:[%s5 + $0xc] sm:$0xf]
  %v107 = vld [vmem:[%s5 + $0x10] sm:$0xf]
  %v108 = vld [vmem:[%s5 + $0x14] sm:$0xf]
  %v109 = vld [vmem:[%s5 + $0x18] sm:$0xf]
  %v110 = vld [vmem:[%s5 + $0x1c] sm:$0xf]
  %v111 = vld [vmem:[%s5 + $0x20] sm:$0xf]
  %v112 = vld [vmem:[%s5 + $0x24] sm:$0xf]
  %v113 = vld [vmem:[%s5 + $0x28] sm:$0xf]
  %v114 = vld [vmem:[%s5 + $0x2c] sm:$0xf]
  %v115 = vld [vmem:[%s5 + $0x30] sm:$0xf]
  %v116 = vld [vmem:[%s5 + $0x34] sm:$0xf]
  %v117 = vld [vmem:[%s5 + $0x38] sm:$0xf]
  %v118 = vld [vmem:[%s5 + $0x3c] sm:$0xf]
  %v119 = vld [vmem:[%s6] sm:$0x1]
  %v121 = vperm.slane %v119, 0
  %v139 = vunpack.c.l.b16 %v103
  %v140 = vunpack.c.l.b16 %v104
  %v141 = vunpack.c.l.b16 %v105
  %v142 = vunpack.c.l.b16 %v106
  %v143 = vunpack.c.l.b16 %v107
  %v144 = vunpack.c.l.b16 %v108
  %v145 = vunpack.c.l.b16 %v109
  %v146 = vunpack.c.l.b16 %v110
  %v147 = vunpack.c.l.b16 %v111
  %v148 = vunpack.c.l.b16 %v112
  %v149 = vunpack.c.l.b16 %v113
  %v150 = vunpack.c.l.b16 %v114
  %v151 = vunpack.c.l.b16 %v115
  %v152 = vunpack.c.l.b16 %v116
  %v153 = vunpack.c.l.b16 %v117
  %v154 = vunpack.c.l.b16 %v118
  %v155 = vpack.c.b16 %v140, %v139
  %v156 = vpack.c.b16 %v142, %v141
  %v157 = vpack.c.b16 %v144, %v143
  %v158 = vpack.c.b16 %v146, %v145
  %v159 = vpack.c.b16 %v148, %v147
  %v160 = vpack.c.b16 %v150, %v149
  %v161 = vpack.c.b16 %v152, %v151
  %v162 = vpack.c.b16 %v154, %v153
  %171 = vmatpush.bf16.msra.mxu0 %v162
  %172 = vmatpush.bf16.msra.mxu0 %v161
  %173 = vmatpush.bf16.msra.mxu0 %v160
  %174 = vmatpush.bf16.msra.mxu0 %v159
  %175 = vmatpush.bf16.msra.mxu0 %v158
  %176 = vmatpush.bf16.msra.mxu0 %v157
  %177 = vmatpush.bf16.msra.mxu0 %v156
  %178 = vmatpush.bf16.msra.mxu0 %v155
  %179 = vmatmul.bf16.gmra.mxu0 %v102
  %v180 = vpop.f32.mrf.mxu0
  %v181 = vadd.f32 %v121, %v180
  %v182 = vpop.f32.mrf.mxu0
  %183 = vdwg.mxu0
  %184 = vst [vmem:[%s7] sm:$0xff] %v181
  // Predicated region
  $region30: #{a_call__.1} parent=0 // pred_check
    _
  $region31: #{a_call__.1} parent=0 // pred_check_branch
    %186 = sbr.rel (0) target = $region33
  $region32: #{a_call__.1} parent=0 // pred_region
    _
  $region33: #{a_call__.1} parent=0 // pred_fallthru
    _
  // Predicated region
  $region34: #{a_call__.1} parent=0 // pred_check
    _
  $region35: #{a_call__.1} parent=0 // pred_check_branch
    %188 = sbr.rel (0) target = $region37
  $region36: #{a_call__.1} parent=0 // pred_region
    _
  $region37: #{a_call__.1} parent=0 // pred_fallthru
    _

</llo_original>
